<compile_context>
chip_gen: v6e
topology: v6e:2x2x1
jax: 0.10.0
libtpu: 0.0.40
codegen_flags: <defaults>
</compile_context>

<pallas_src>
import functools

import jax
import jax.numpy as jnp
from jax import lax
from jax.experimental import pallas as pl
from jax.experimental.pallas import tpu as pltpu


def _round_up(v, m):
    return ((v + m - 1) // m) * m


def _pad_to(a, axis, size):
    if a.shape[axis] == size:
        return a
    pads = [(0, 0)] * a.ndim
    pads[axis] = (0, size - a.shape[axis])
    return jnp.pad(a, pads)


# --------------------------------------------------------------------------
# Kernel A: shared adjacency (adj batch dim == 1).
# One 2-D tiled matmul against the batch-concatenated features.
# grid = (row_tiles, lane_tiles, k_tiles[reduction, last]).
# The adjacency block index depends only on (i, k), so the N^2 stream is
# DMA'd lane_tiles times in total (once when B*F fits one lane tile) --
# independent of the batch size.
# --------------------------------------------------------------------------
def _shared_adj_kernel(adj_ref, xc_ref, drow_ref, o_ref, acc_ref):
    k = pl.program_id(2)

    @pl.when(k == 0)
    def _init():
        acc_ref[...] = jnp.zeros_like(acc_ref)

    xc = xc_ref[...]                                    # (TK, TC) compute dtype
    acc_ref[...] += jnp.dot(adj_ref[...].astype(xc.dtype), xc,
                            preferred_element_type=jnp.float32)

    @pl.when(k == pl.num_programs(2) - 1)
    def _finalize():
        # row scaling d_i (f32); padded rows have d=0 contributions anyway.
        o_ref[...] = (acc_ref[...] * drow_ref[...]).astype(o_ref.dtype)


# --------------------------------------------------------------------------
# Kernel B: per-batch adjacency (adj batch dim == B).
# grid = (batch_blocks, row_tiles, k_tiles[reduction, last]).
# Each graph's adjacency must be streamed once regardless; `bb` graphs per
# grid step amortize the fixed per-step overhead for small graphs.
# --------------------------------------------------------------------------
def _batched_adj_kernel(xd_ref, adj_ref, drow_ref, mask_ref, w_ref, b_ref,
                        o_ref, acc_ref, *, bb, apply_weight):
    k = pl.program_id(2)

    @pl.when(k == 0)
    def _init():
        acc_ref[...] = jnp.zeros_like(acc_ref)

    for g in range(bb):
        xd = xd_ref[g]                                  # (TK, Fi) compute dtype
        acc_ref[g] += jnp.dot(adj_ref[g].astype(xd.dtype), xd,
                              preferred_element_type=jnp.float32)

    @pl.when(k == pl.num_programs(2) - 1)
    def _finalize():
        bias = b_ref[...].astype(jnp.float32)           # (1, Cp)
        for g in range(bb):
            h = acc_ref[g] * drow_ref[g]                # (TM, Fi) f32
            if apply_weight:
                w = w_ref[...]                          # (Fi, Cp)
                h = jnp.dot(h.astype(w.dtype), w,
                            preferred_element_type=jnp.float32)
            # bias then mask (exact PyTorch order); padded rows get bias when
            # mask is None but are sliced off before returning.
            h = (h + bias) * mask_ref[g]
            o_ref[g] = h.astype(o_ref.dtype)


def dense_gcn_conv(x, adj, weight, bias=None, mask=None, add_loop=True,
                   improved=False, *, compute_dtype=jnp.bfloat16,
                   block_n=512, max_lane_block=512, batch_block=None,
                   unweighted_adj=None):
    """Pallas implementation of DenseGCNConv.forward.

    x: (B, N, F) or (N, F); adj: (Ba, N, N) or (N, N) with Ba in {1, B}
    (batch-broadcastable); weight: (F, C); bias: (C,) or None; mask: (B, N)
    or None.  Returns (B, N, C) in x.dtype.

    compute_dtype=jnp.float32 reproduces float32 PyTorch numerics; the bf16
    default rounds only the node features / weight operands of the matmuls.
    """
    if x.ndim == 2:
        x = x[None]
    if adj.ndim == 2:
        adj = adj[None]

    B, N, F = x.shape
    C = weight.shape[1]
    assert weight.shape[0] == F
    B_adj = adj.shape[0]
    assert B_adj in (1, B), "adj batch dim must be 1 (shared) or equal to B"
    shared_adj = B_adj == 1
    out_dtype = x.dtype
    loop_val = 2.0 if improved else 1.0

    # ---- tiling choices ---------------------------------------------------
    if N <= block_n:
        tile_n, n_pad = N, N
    else:
        assert block_n % 128 == 0, "block_n must be a multiple of 128"
        tile_n = block_n
        n_pad = _round_up(N, tile_n)
    c_pad = _round_up(C, 128)                 # lane-dense output stores

    # ---- adjacency HBM dtype (dominant stream) ----------------------------
    # int8 is exact for {0,1} adjacencies (+ self-loop value 1 or 2) and
    # halves the stream vs bf16; the cast to the MXU dtype is VPU work hidden
    # under the DMA.  Weighted adjacencies stay in compute_dtype.
    if unweighted_adj is None:
        if adj.dtype == jnp.bool_:
            unweighted_adj = True
        elif isinstance(adj, jax.core.Tracer):
            unweighted_adj = False            # can't inspect values under jit
        else:
            unweighted_adj = bool(jnp.all((adj == 0) | (adj == 1)))
    use_int8 = bool(unweighted_adj) and (tile_n % 32 == 0)
    adj_store_dtype = jnp.int8 if use_int8 else compute_dtype

    # ---- one-time (per adjacency) preprocessing ----------------------------
    # TODO(synk): when the same adjacency is reused across calls, the padded /
    # cast adjacency and d_inv_sqrt below should be computed once and cached
    # by the caller; for one-shot calls these elementwise passes over N^2 are
    # an unavoidable extra ~5 bytes/elem of HBM traffic.
    adj_f = adj.astype(jnp.float32)
    deg = jnp.sum(adj_f, axis=-1)                                # (B_adj, N)
    if add_loop:
        diag = jnp.diagonal(adj_f, axis1=-2, axis2=-1)           # (B_adj, N)
        deg = deg - diag + jnp.float32(loop_val)
        eye = jnp.eye(N, dtype=jnp.bool_)
        adj_f = jnp.where(eye, jnp.float32(loop_val), adj_f)
    d = lax.rsqrt(jnp.maximum(deg, 1.0))                         # (B_adj, N) f32

    # ---- projection order & column-normalized features --------------------
    if F <= C:
        feat = x.astype(jnp.float32)                             # aggregate→project
        apply_weight = True
    else:
        feat = jnp.einsum("bnf,fc->bnc", x.astype(jnp.float32),
                          weight.astype(jnp.float32))            # project→aggregate
        apply_weight = False
    fi = feat.shape[-1]
    feat = feat * d[..., :, None]        # fold D^-1/2 (columns) in ONCE, in f32

    # =======================================================================
    # Case A: shared adjacency -> single 2-D matmul over concatenated batch.
    # =======================================================================
    if shared_adj:
        assert max_lane_block % 128 == 0 and max_lane_block >= 128
        L = B * fi
        if L <= max_lane_block:
            tile_c = _round_up(max(L, 1), 128)
            l_pad = tile_c
        else:
            tile_c = max_lane_block
            l_pad = _round_up(L, tile_c)

        # (B, N, fi) -> (N, B*fi); layout plumbing done once in the wrapper.
        xc = jnp.transpose(feat, (1, 0, 2)).reshape(N, L)
        xc = _pad_to(_pad_to(xc, 0, n_pad), 1, l_pad).astype(compute_dtype)
        adj_k = _pad_to(_pad_to(adj_f[0], 0, n_pad), 1, n_pad)
        adj_k = adj_k.astype(adj_store_dtype)
        drow = _pad_to(d[0][:, None], 0, n_pad)                  # (Np, 1) f32

        grid = (n_pad // tile_n, l_pad // tile_c, n_pad // tile_n)
        hc = pl.pallas_call(
            _shared_adj_kernel,
            out_shape=jax.ShapeDtypeStruct((n_pad, l_pad), jnp.float32),
            grid_spec=pltpu.PrefetchScalarGridSpec(
                num_scalar_prefetch=0,
                grid=grid,
                in_specs=[
                    pl.BlockSpec((tile_n, tile_n), lambda i, j, k: (i, k)),   # A
                    pl.BlockSpec((tile_n, tile_c), lambda i, j, k: (k, j)),   # Xc
                    pl.BlockSpec((tile_n, 1), lambda i, j, k: (i, 0)),        # d_i
                ],
                out_specs=pl.BlockSpec((tile_n, tile_c),
                                       lambda i, j, k: (i, j)),
                scratch_shapes=[pltpu.VMEM((tile_n, tile_c), jnp.float32)],
            ),
            compiler_params=pltpu.CompilerParams(
                dimension_semantics=("parallel", "parallel", "arbitrary")),
        )(adj_k, xc, drow)

        # un-concatenate, project (if deferred), bias, mask -- all O(B*N*C).
        h = hc[:N, :L].reshape(N, B, fi).transpose(1, 0, 2)      # (B, N, fi) f32
        out = (jnp.einsum("bnf,fc->bnc", h, weight.astype(jnp.float32))
               if apply_weight else h)
        if bias is not None:
            out = out + bias.astype(jnp.float32)
        if mask is not None:
            out = out * mask.reshape(B, N, 1).astype(jnp.float32)
        return out.astype(out_dtype)

    # =======================================================================
    # Case B: per-batch adjacency.
    # =======================================================================
    if batch_block is None:
        bb = max(1, min(B, 512 // max(tile_n, 1)))   # amortize tiny graphs
        while B % bb:
            bb -= 1
    else:
        bb = int(batch_block)
        assert 1 <= bb <= B and B % bb == 0

    if apply_weight:
        xd = feat                                                 # (B, N, F)
        f_in = fi
        w_in = _pad_to(weight.astype(compute_dtype), 1, c_pad)    # (F, Cp)
    else:
        xd = _pad_to(feat, 2, c_pad)                              # (B, N, Cp)
        f_in = c_pad
        w_in = jnp.zeros((1, c_pad), compute_dtype)               # unused
    xd = _pad_to(xd, 1, n_pad).astype(compute_dtype)              # (B, Np, Fi)

    adj_k = _pad_to(_pad_to(adj_f, 1, n_pad), 2, n_pad).astype(adj_store_dtype)
    drow = _pad_to(d, 1, n_pad)[..., None]                        # (B, Np, 1) f32

    if bias is None:
        b2 = jnp.zeros((1, c_pad), jnp.float32)
    else:
        b2 = _pad_to(bias.reshape(1, C).astype(jnp.float32), 1, c_pad)
    if mask is None:
        m3 = jnp.ones((B, n_pad, 1), jnp.float32)
    else:
        m3 = _pad_to(mask.reshape(B, N).astype(jnp.float32), 1, n_pad)[..., None]

    grid = (B // bb, n_pad // tile_n, n_pad // tile_n)
    kernel = functools.partial(_batched_adj_kernel, bb=bb,
                               apply_weight=apply_weight)
    out = pl.pallas_call(
        kernel,
        out_shape=jax.ShapeDtypeStruct((B, n_pad, c_pad), out_dtype),
        grid_spec=pltpu.PrefetchScalarGridSpec(
            num_scalar_prefetch=0,
            grid=grid,
            in_specs=[
                pl.BlockSpec((bb, tile_n, f_in), lambda b, i, k: (b, k, 0)),    # Xd
                pl.BlockSpec((bb, tile_n, tile_n), lambda b, i, k: (b, i, k)),  # A
                pl.BlockSpec((bb, tile_n, 1), lambda b, i, k: (b, i, 0)),       # d_i
                pl.BlockSpec((bb, tile_n, 1), lambda b, i, k: (b, i, 0)),       # mask
                pl.BlockSpec(w_in.shape, lambda b, i, k: (0, 0)),               # W
                pl.BlockSpec((1, c_pad), lambda b, i, k: (0, 0)),               # bias
            ],
            out_specs=pl.BlockSpec((bb, tile_n, c_pad),
                                   lambda b, i, k: (b, i, 0)),
            scratch_shapes=[pltpu.VMEM((bb, tile_n, f_in), jnp.float32)],
        ),
        compiler_params=pltpu.CompilerParams(
            dimension_semantics=("parallel", "parallel", "arbitrary")),
    )(xd, adj_k, drow, m3, w_in, b2)

    return out[:, :N, :C]


# --------------------------------------------------------------------------
# Plain-JAX reference mirroring the PyTorch forward.
# --------------------------------------------------------------------------
def _reference(x, adj, weight, bias, mask, add_loop=True, improved=False):
    if x.ndim == 2:
        x = x[None]
    if adj.ndim == 2:
        adj = adj[None]
    B = x.shape[0]
    N = adj.shape[-1]
    adj = jnp.broadcast_to(adj.astype(jnp.float32), (B, N, N))
    if add_loop:
        eye = jnp.eye(N, dtype=jnp.bool_)
        adj = jnp.where(eye, jnp.float32(2.0 if improved else 1.0), adj)
    out = x.astype(jnp.float32) @ weight.astype(jnp.float32)
    deg_inv_sqrt = jnp.maximum(adj.sum(-1), 1.0) ** -0.5
    adj = deg_inv_sqrt[..., :, None] * adj * deg_inv_sqrt[..., None, :]
    out = adj @ out
    if bias is not None:
        out = out + bias.astype(jnp.float32)
    if mask is not None:
        out = out * mask.reshape(B, N, 1).astype(jnp.float32)
    return out


if __name__ == "__main__":
    key = jax.random.PRNGKey(0)
    ks = jax.random.split(key, 16)

    def glorot(k, fan_in, fan_out):
        limit = jnp.sqrt(6.0 / (fan_in + fan_out))
        return jax.random.uniform(k, (fan_in, fan_out), minval=-limit,
                                  maxval=limit, dtype=jnp.float32)

    # --- 1. shared adjacency, tiny graphs (Case A, single tile) ------------
    B, N, F, C = 2, 16, 8, 32
    x = jax.random.normal(ks[0], (B, N, F), dtype=jnp.float32)
    a = (jax.random.uniform(ks[1], (1, N, N)) > 0.7).astype(jnp.float32)
    adj = jnp.maximum(a, jnp.swapaxes(a, -1, -2))
    w = glorot(ks[2], F, C)
    b = 0.1 * jax.random.normal(ks[3], (C,), dtype=jnp.float32)
    m = jax.random.uniform(ks[4], (B, N)) > 0.2

    ref = _reference(x, adj, w, b, m)
    out = dense_gcn_conv(x, adj, w, bias=b, mask=m, compute_dtype=jnp.float32)
    out = jax.block_until_ready(out)
    assert out.shape == (B, N, C)
    assert jnp.allclose(out, ref, atol=2e-3, rtol=2e-3), (
        "shared f32 mismatch: %s" % jnp.max(jnp.abs(out - ref)))

    out = dense_gcn_conv(x, adj, w, bias=b, mask=m)            # bf16 fast path
    out = jax.block_until_ready(out)
    assert jnp.allclose(out, ref, atol=3e-2, rtol=3e-2), (
        "shared bf16 mismatch: %s" % jnp.max(jnp.abs(out - ref)))

    # --- 2. shared adjacency, tiled rows/lanes/reduction (Case A) ----------
    # block_n / max_lane_block are shrunk purely to exercise the multi-tile
    # grid at small N; the production default is block_n=512.
    B2, N2, F2, C2 = 20, 200, 8, 32
    x2 = jax.random.normal(ks[5], (B2, N2, F2), dtype=jnp.float32)
    a2 = (jax.random.uniform(ks[6], (1, N2, N2)) > 0.8).astype(jnp.float32)
    adj2 = jnp.maximum(a2, jnp.swapaxes(a2, -1, -2))
    w2 = glorot(ks[7], F2, C2)
    ref2 = _reference(x2, adj2, w2, None, None, improved=True)
    out2 = dense_gcn_conv(x2, adj2, w2, improved=True, block_n=128,
                          max_lane_block=128)
    out2 = jax.block_until_ready(out2)
    assert out2.shape == (B2, N2, C2)
    assert jnp.allclose(out2, ref2, atol=3e-2, rtol=3e-2), (
        "shared tiled mismatch: %s" % jnp.max(jnp.abs(out2 - ref2)))

    # --- 3. per-batch adjacency, tiled, fused projection (Case B, F<=C) ----
    B3, N3, F3, C3 = 2, 200, 8, 32
    x3 = jax.random.normal(ks[8], (B3, N3, F3), dtype=jnp.float32)
    a3 = (jax.random.uniform(ks[9], (B3, N3, N3)) > 0.8).astype(jnp.float32)
    adj3 = jnp.maximum(a3, jnp.swapaxes(a3, -1, -2))
    w3 = glorot(ks[10], F3, C3)
    b3 = 0.1 * jax.random.normal(ks[11], (C3,), dtype=jnp.float32)
    m3v = jax.random.uniform(ks[12], (B3, N3)) > 0.1
    ref3 = _reference(x3, adj3, w3, b3, m3v)
    out3 = dense_gcn_conv(x3, adj3, w3, bias=b3, mask=m3v, block_n=128)
    out3 = jax.block_until_ready(out3)
    assert out3.shape == (B3, N3, C3)
    assert jnp.allclose(out3, ref3, atol=3e-2, rtol=3e-2), (
        "batched tiled mismatch: %s" % jnp.max(jnp.abs(out3 - ref3)))

    # --- 4. per-batch adjacency, project-first path (Case B, F > C) --------
    B4, N4, F4, C4 = 2, 48, 40, 16
    x4 = jax.random.normal(ks[13], (B4, N4, F4), dtype=jnp.float32)
    a4 = (jax.random.uniform(ks[14], (B4, N4, N4)) > 0.7).astype(jnp.float32)
    adj4 = jnp.maximum(a4, jnp.swapaxes(a4, -1, -2))
    w4 = glorot(ks[15], F4, C4)
    m4 = jax.random.uniform(ks[12], (B4, N4)) > 0.3
    ref4 = _reference(x4, adj4, w4, None, m4)
    out4 = dense_gcn_conv(x4, adj4, w4, bias=None, mask=m4)
    out4 = jax.block_until_ready(out4)
    assert out4.shape == (B4, N4, C4)
    assert jnp.allclose(out4, ref4, atol=3e-2, rtol=3e-2), (
        "project-first mismatch: %s" % jnp.max(jnp.abs(out4 - ref4)))

    # --- 5. 2-D inputs (implicit batch of 1), F > C -------------------------
    x5 = x4[0]
    adj5 = adj4[0]
    ref5 = _reference(x5, adj5, w4, None, None)
    out5 = dense_gcn_conv(x5, adj5, w4)
    out5 = jax.block_until_ready(out5)
    assert out5.shape == (1, N4, C4)
    assert jnp.allclose(out5, ref5, atol=3e-2, rtol=3e-2), (
        "2-D input mismatch: %s" % jnp.max(jnp.abs(out5 - ref5)))

    print("KERNEL_OK")
</pallas_src>

<mosaic_0001>
module attributes {stable_mosaic.version = 11 : i64} {
  func.func @_shared_adj_kernel(%arg0: i32, %arg1: i32, %arg2: i32, %arg3: memref<16x16xf32, #tpu.memory_space<vmem>>, %arg4: memref<16x128xf32, #tpu.memory_space<vmem>>, %arg5: memref<16x1xf32, #tpu.memory_space<vmem>>, %arg6: memref<16x128xf32, #tpu.memory_space<vmem>>, %arg7: memref<16x128xf32, #tpu.memory_space<vmem>>) attributes {dimension_semantics = [#tpu.dimension_semantics<parallel>, #tpu.dimension_semantics<parallel>, #tpu.dimension_semantics<arbitrary>], iteration_bounds = array<i64: 1, 1, 1>, scalar_prefetch = 0 : i64, scratch_operands = 1 : i64, tpu.core_type = #tpu.core_type<tc>, window_params = [{transform_indices = @transform_0, window_bounds = array<i64: 16, 16>}, {transform_indices = @transform_1, window_bounds = array<i64: 16, 128>}, {transform_indices = @transform_2, window_bounds = array<i64: 16, 1>}, {transform_indices = @transform_3, window_bounds = array<i64: 16, 128>}]} {
    %c0_i32 = arith.constant 0 : i32
    %0 = arith.cmpi eq, %arg2, %c0_i32 : i32
    %1 = arith.extui %0 : i1 to i32
    %c0_i32_0 = arith.constant 0 : i32
    %2 = arith.cmpi ne, %1, %c0_i32_0 : i32
    scf.if %2 {
      %cst_10 = arith.constant 0.000000e+00 : f32
      %12 = vector.broadcast %cst_10 : f32 to vector<16x128xf32>
      %c0_11 = arith.constant 0 : index
      %c0_12 = arith.constant 0 : index
      %13 = vector.load %arg7[%c0_11, %c0_12] : memref<16x128xf32, #tpu.memory_space<vmem>>, vector<16x128xf32>
      tpu.vector_store %arg7[%c0_11, %c0_12], %12 {strides = array<i32>} : memref<16x128xf32, #tpu.memory_space<vmem>>, vector<16x128xf32>,
    } else {
    }
    %c0 = arith.constant 0 : index
    %c0_1 = arith.constant 0 : index
    %3 = vector.load %arg4[%c0, %c0_1] : memref<16x128xf32, #tpu.memory_space<vmem>>, vector<16x128xf32>
    %c0_2 = arith.constant 0 : index
    %c0_3 = arith.constant 0 : index
    %4 = vector.load %arg7[%c0_2, %c0_3] : memref<16x128xf32, #tpu.memory_space<vmem>>, vector<16x128xf32>
    %c0_4 = arith.constant 0 : index
    %c0_5 = arith.constant 0 : index
    %5 = vector.load %arg3[%c0_4, %c0_5] : memref<16x16xf32, #tpu.memory_space<vmem>>, vector<16x16xf32>
    %cst = arith.constant dense<0.000000e+00> : vector<16x128xf32>
    %6 = tpu.matmul %5, %3, %cst {dimension_numbers = #tpu.dot_dimension_numbers<[1], [0], [0], [1], [0, 0, 1, 1], [], []>} : vector<16x16xf32>, vector<16x128xf32>, vector<16x128xf32> -> vector<16x128xf32>
    %7 = arith.addf %4, %6 : vector<16x128xf32>
    %c0_6 = arith.constant 0 : index
    %c0_7 = arith.constant 0 : index
    %8 = vector.load %arg7[%c0_6, %c0_7] : memref<16x128xf32, #tpu.memory_space<vmem>>, vector<16x128xf32>
    tpu.vector_store %arg7[%c0_6, %c0_7], %7 {strides = array<i32>} : memref<16x128xf32, #tpu.memory_space<vmem>>, vector<16x128xf32>,
    %c0_i32_8 = arith.constant 0 : i32
    %9 = arith.cmpi eq, %arg2, %c0_i32_8 : i32
    %10 = arith.extui %9 : i1 to i32
    %c0_i32_9 = arith.constant 0 : i32
    %11 = arith.cmpi ne, %10, %c0_i32_9 : i32
    scf.if %11 {
      %c0_10 = arith.constant 0 : index
      %c0_11 = arith.constant 0 : index
      %12 = vector.load %arg7[%c0_10, %c0_11] : memref<16x128xf32, #tpu.memory_space<vmem>>, vector<16x128xf32>
      %c0_12 = arith.constant 0 : index
      %c0_13 = arith.constant 0 : index
      %13 = vector.load %arg5[%c0_12, %c0_13] : memref<16x1xf32, #tpu.memory_space<vmem>>, vector<16x1xf32>
      %14 = vector.broadcast %13 : vector<16x1xf32> to vector<16x128xf32>
      %15 = arith.mulf %12, %14 : vector<16x128xf32>
      %c0_14 = arith.constant 0 : index
      %c0_15 = arith.constant 0 : index
      %16 = vector.load %arg6[%c0_14, %c0_15] : memref<16x128xf32, #tpu.memory_space<vmem>>, vector<16x128xf32>
      tpu.vector_store %arg6[%c0_14, %c0_15], %15 {strides = array<i32>} : memref<16x128xf32, #tpu.memory_space<vmem>>, vector<16x128xf32>,
    } else {
    }
    return
  }
  func.func @transform_0(%arg0: i32, %arg1: i32, %arg2: i32) -> (i32, i32) {
    %c0_i32 = arith.constant 0 : i32
    return %arg0, %arg2 : i32, i32
  }
  func.func @transform_1(%arg0: i32, %arg1: i32, %arg2: i32) -> (i32, i32) {
    %c0_i32 = arith.constant 0 : i32
    return %arg2, %arg1 : i32, i32
  }
  func.func @transform_2(%arg0: i32, %arg1: i32, %arg2: i32) -> (i32, i32) {
    %c0_i32 = arith.constant 0 : i32
    %c0_i32_0 = arith.constant 0 : i32
    return %arg0, %c0_i32 : i32, i32
  }
  func.func @transform_3(%arg0: i32, %arg1: i32, %arg2: i32) -> (i32, i32) {
    %c0_i32 = arith.constant 0 : i32
    return %arg0, %arg1 : i32, i32
  }
}

</mosaic_0001>

<llo_original>
// kernel: tpu_custom_call.1
$region0: #{tpu_custom_call.1}
  #allocation0 [shape = 'u32[]', space=smem, size = 0x4, offset = 0x4, fixed_abs, tag = 'smem constant byte address 0x4 - core index']
  #allocation1 [shape = 'u32[144,128]{1,0:T(1,128)}', space=vmem, size = 0x12000, scoped, tag = 'internal scratch']
  #allocation2 [shape = 'f32[16,128]{1,0:T(8,128)}', space=vmem, size = 0x2000, scoped, tag = 'scratch operand']
  %s0 = inlined_call_operand.vmem [shape: f32[16,16], index: 0, kind: input, shape index: {}]
  %s1 = inlined_call_operand.hbm [shape: f32[16,128], index: 1, kind: input, shape index: {}]
  %s2 = inlined_call_operand.vmem [shape: f32[16,1], index: 2, kind: input, shape index: {}]
  %s3 = inlined_call_operand.hbm [shape: f32[16,128], index: 3, kind: output, shape index: {}]
  %s4 = sld [smem:[#allocation0]]
  $region34: #{tpu_custom_call.1} parent=0
    _
  %s6 = ssub.s32 1, %s4
  %s7 = scalar_select 0, %s6, %s4
  $region1: #{tpu_custom_call.1} parent=0
    #allocation3 [shape = 'u8[8192]{0}', space=vmem, size = 0x2000, scoped, tag = 'input window, operand 1, single buffered']
    #allocation4 [shape = 's32[1]{0}', space=sflag, size = 0x4, scoped, tag = 'scoped memory for tpu_custom_call.1']
    #allocation5 [shape = 's32[1]{0}', space=sflag, size = 0x4, scoped, tag = 'scoped memory for tpu_custom_call.1']
    #allocation6 [shape = 'u8[8192]{0}', space=vmem, size = 0x2000, scoped, tag = 'output window, operand 0, single buffered']
    %8 = vsyncpa [#allocation4], 0
    %9 = vsyncpa [#allocation5], 0
    // Predicated region
    $region2: #{tpu_custom_call.1} parent=1 // pred_check
      _
    $region3: #{tpu_custom_call.1} parent=1 // pred_check_branch
      %11 = sbr.rel (0) target = $region5
    $region4: #{tpu_custom_call.1} parent=1 // pred_region
      _
    $region5: #{tpu_custom_call.1} parent=1 // pred_fallthru
      _
    // Predicated region
    $region6: #{tpu_custom_call.1} parent=1 // pred_check
      _
    $region7: #{tpu_custom_call.1} parent=1 // pred_check_branch
      %13 = sbr.rel (0) target = $region9
    $region8: #{tpu_custom_call.1} parent=1 // pred_region
      %s15 = ssub.s32 256, 256
      %16 = vsyncadd [#allocation4], %s15
      %s17 = sshll.u32 [#allocation3], 4
      %s18 = int_to_ptr.vmem [resolvable:$true] %s17
      %23 = dma.hbm_to_vmem [thread:$0]  %s1, 256, %s18, [#allocation4], 128, 128, 8
    $region9: #{tpu_custom_call.1} parent=1 // pred_fallthru
      _
    // Predicated region
    $region10: #{tpu_custom_call.1} parent=1 // pred_check
      _
    $region11: #{tpu_custom_call.1} parent=1 // pred_check_branch
      %25 = sbr.rel (0) target = $region13
    $region12: #{tpu_custom_call.1} parent=1 // pred_region
      _
    $region13: #{tpu_custom_call.1} parent=1 // pred_fallthru
      _
    // Predicated region
    $region14: #{tpu_custom_call.1} parent=1 // pred_check
      _
    $region15: #{tpu_custom_call.1} parent=1 // pred_check_branch
      %27 = sbr.rel (0) target = $region17
    $region16: #{tpu_custom_call.1} parent=1 // pred_region
      %28 = dma.done [#allocation4], 256
    $region17: #{tpu_custom_call.1} parent=1 // pred_fallthru
      _
    %p29 = scmp.eq.s32.totalorder 0, 0
    // Predicated region
    $region18: #{tpu_custom_call.1} parent=1 // pred_check
      %p30 = pneg %p29
    $region19: #{tpu_custom_call.1} parent=1 // pred_check_branch
      %32 = sbr.rel (%p30) target = $region21
    $region20: #{tpu_custom_call.1} parent=1 // pred_region
      %33 = vst [vmem:[#allocation2] sm:$0xff] 0.0
      %34 = vst [vmem:[#allocation2 + $0x8] sm:$0xff] 0.0
    $region21: #{tpu_custom_call.1} parent=1 // pred_fallthru
      _
    %v35 = vld [vmem:[#allocation3] sm:$0xff]
    %v36 = vld [vmem:[#allocation3 + $0x8] sm:$0xff]
    %v37 = vld [vmem:[#allocation2] sm:$0xff]
    %v38 = vld [vmem:[#allocation2 + $0x8] sm:$0xff]
    %v39 = vld [vmem:[%s0] sm:$0xff]
    %v40 = vld [vmem:[%s0 + $0x8] sm:$0xff]
    %vm41 = vcmask 130048
    %v43 = vsel %vm41, %v39, 0
    %v46 = vsel %vm41, %v40, 0
    %48 = vmatprep.subr.mxu0 0.0
    %49 = vmatpush1.msra.mxu0 0.0
    %50 = vmatprep.subr.mxu0 0.0
    %51 = vmatpush1.msra.mxu0 0.0
    %52 = vmatprep.subr.mxu0 0.0
    %53 = vmatpush1.msra.mxu0 0.0
    %54 = vmatprep.subr.mxu0 0.0
    %55 = vmatpush1.msra.mxu0 0.0
    %56 = vmatprep.subr.mxu0 0.0
    %57 = vmatpush1.msra.mxu0 0.0
    %58 = vmatprep.subr.mxu0 0.0
    %59 = vmatpush1.msra.mxu0 0.0
    %60 = vmatprep.subr.mxu0 0.0
    %61 = vmatpush1.msra.mxu0 0.0
    %62 = vmatprep.subr.mxu0 0.0
    %63 = vmatpush1.msra.mxu0 0.0
    %64 = vmatprep.subr.mxu0 0.0
    %65 = vmatpush1.msra.mxu0 0.0
    %66 = vmatprep.subr.mxu0 0.0
    %67 = vmatpush1.msra.mxu0 0.0
    %68 = vmatprep.subr.mxu0 0.0
    %69 = vmatpush1.msra.mxu0 0.0
    %70 = vmatprep.subr.mxu0 0.0
    %71 = vmatpush1.msra.mxu0 0.0
    %72 = vmatprep.subr.mxu0 0.0
    %73 = vmatpush1.msra.mxu0 0.0
    %74 = vmatprep.subr.mxu0 0.0
    %75 = vmatpush1.msra.mxu0 0.0
    %76 = vmatprep.subr.mxu0 0.0
    %77 = vmatpush1.msra.mxu0 %v36
    %78 = vmatprep.subr.mxu0 0.0
    %79 = vmatpush1.msra.mxu0 %v35
    %80 = vmatprep.subr.mxu0 0.0
    %81 = vmatpush2.msra.mxu0 0.0
    %82 = vmatprep.subr.mxu0 0.0
    %83 = vmatpush2.msra.mxu0 0.0
    %84 = vmatprep.subr.mxu0 0.0
    %85 = vmatpush2.msra.mxu0 0.0
    %86 = vmatprep.subr.mxu0 0.0
    %87 = vmatpush2.msra.mxu0 0.0
    %88 = vmatprep.subr.mxu0 0.0
    %89 = vmatpush2.msra.mxu0 0.0
    %90 = vmatprep.subr.mxu0 0.0
    %91 = vmatpush2.msra.mxu0 0.0
    %92 = vmatprep.subr.mxu0 0.0
    %93 = vmatpush2.msra.mxu0 0.0
    %94 = vmatprep.subr.mxu0 0.0
    %95 = vmatpush2.msra.mxu0 0.0
    %96 = vmatprep.subr.mxu0 0.0
    %97 = vmatpush2.msra.mxu0 0.0
    %98 = vmatprep.subr.mxu0 0.0
    %99 = vmatpush2.msra.mxu0 0.0
    %100 = vmatprep.subr.mxu0 0.0
    %101 = vmatpush2.msra.mxu0 0.0
    %102 = vmatprep.subr.mxu0 0.0
    %103 = vmatpush2.msra.mxu0 0.0
    %104 = vmatprep.subr.mxu0 0.0
    %105 = vmatpush2.msra.mxu0 0.0
    %106 = vmatprep.subr.mxu0 0.0
    %107 = vmatpush2.msra.mxu0 0.0
    %108 = vmatprep.subr.mxu0 0.0
    %109 = vmatpush2.msra.mxu0 0.0
    %110 = vmatprep.subr.mxu0 0.0
    %111 = vmatpush2.msra.mxu0 0.0
    %112 = vmatprep.mubr.f32.mxu0 0.0
    %113 = vmatmul.mubr.f32.gmra.mxu0 %v43
    %v114 = vpop.f32.mrf.mxu0
    %v115 = vadd.f32 0.0, %v114
    %v116 = vpop.f32.mrf.mxu0
    %117 = vmatprep.mubr.f32.mxu0 0.0
    %118 = vmatmul.mubr.f32.gmra.mxu0 %v46
    %v119 = vpop.f32.mrf.mxu0
    %v120 = vadd.f32 0.0, %v119
    %v121 = vpop.f32.mrf.mxu0
    %122 = vdwg.mxu0
    %v123 = vadd.f32 %v37, %v115
    %v124 = vadd.f32 %v38, %v120
    %125 = vst [vmem:[#allocation2] sm:$0xff] %v123
    %126 = vst [vmem:[#allocation2 + $0x8] sm:$0xff] %v124
    // Predicated region
    $region22: #{tpu_custom_call.1} parent=1 // pred_check
      %p127 = pneg %p29
    $region23: #{tpu_custom_call.1} parent=1 // pred_check_branch
      %129 = sbr.rel (%p127) target = $region25
    $region24: #{tpu_custom_call.1} parent=1 // pred_region
      %v130 = vld [vmem:[#allocation2] sm:$0xff]
      %v131 = vld [vmem:[#allocation2 + $0x8] sm:$0xff]
      %v132 = vld [vmem:[%s2] sm:$0xff]
      %v133 = vld [vmem:[%s2 + $0x8] sm:$0xff]
      %135 = vset.pattern.permute.xlu0 0
      %136 = vperm.xlu0 %135, %v132
      %v137 = vpop.permute.xlu0 %136
      %140 = vset.pattern.permute.xlu0 0
      %141 = vperm.xlu0 %140, %v133
      %v142 = vpop.permute.xlu0 %141
      %v144 = vmul.f32 %v130, %v137
      %v145 = vmul.f32 %v131, %v142
      %146 = vst [vmem:[#allocation6] sm:$0xff] %v144
      %147 = vst [vmem:[#allocation6 + $0x8] sm:$0xff] %v145
    $region25: #{tpu_custom_call.1} parent=1 // pred_fallthru
      _
    // Predicated region
    $region26: #{tpu_custom_call.1} parent=1 // pred_check
      _
    $region27: #{tpu_custom_call.1} parent=1 // pred_check_branch
      %149 = sbr.rel (0) target = $region29
    $region28: #{tpu_custom_call.1} parent=1 // pred_region
      %s151 = ssub.s32 256, 256
      %152 = vsyncadd [#allocation5], %s151
      %s153 = sshll.u32 [#allocation6], 4
      %s154 = int_to_ptr.vmem [resolvable:$true] %s153
      %159 = dma.vmem_to_hbm [thread:$0]  %s154, 256, %s3, [#allocation5], 128, 128, 8
    $region29: #{tpu_custom_call.1} parent=1 // pred_fallthru
      _
    // Predicated region
    $region30: #{tpu_custom_call.1} parent=1 // pred_check
      _
    $region31: #{tpu_custom_call.1} parent=1 // pred_check_branch
      %161 = sbr.rel (0) target = $region33
    $region32: #{tpu_custom_call.1} parent=1 // pred_region
      %162 = dma.done [#allocation5], 256
    $region33: #{tpu_custom_call.1} parent=1 // pred_fallthru
      _
    %163 = vsyncpa [#allocation4], 1
    %164 = vsyncpa [#allocation5], 1

</llo_original>
